<compile_context>
chip_gen: v5e
topology: v5e:2x2
jax: 0.10.0
libtpu: 0.0.40
codegen_flags: <defaults>
</compile_context>

<pallas_src>
import functools

import jax
import jax.numpy as jnp
from jax.experimental import pallas as pl
from jax.experimental.pallas import tpu as pltpu


def _round_up(x, m):
    return ((x + m - 1) // m) * m


# --------------------------------------------------------------------------
# Edge layout: sort edges by target and pack each node tile's edges into its
# own run of edge tiles.  T = ceil(E/te) + num_node_blocks is a static upper
# bound on the number of edge tiles; layout-padding edges carry tgt = -1 so
# they can never match the one-hot scatter.
# --------------------------------------------------------------------------
def build_edge_layout(tgt, num_nodes, edge_tile, node_tile):
    E = int(tgt.shape[0])
    te, tn = edge_tile, node_tile
    Np = _round_up(num_nodes, tn)
    NB = Np // tn
    T = -(-E // te) + NB                          # static tile-count bound

    tgt = tgt.astype(jnp.int32)
    order = jnp.argsort(tgt)
    tgt_s = tgt[order]

    bounds = jnp.arange(NB + 1, dtype=jnp.int32) * tn
    row_start = jnp.searchsorted(tgt_s, bounds, side='left').astype(jnp.int32)
    cnt = row_start[1:] - row_start[:-1]                             # (NB,)
    nt = jnp.maximum(1, (cnt + te - 1) // te).astype(jnp.int32)      # tiles/blk
    tile_end = jnp.cumsum(nt)
    tile_start = tile_end - nt

    # tile index -> node block (contiguous, monotone; trailing spare tiles are
    # all-padding and attached to the last block).
    tile_node = jnp.minimum(
        jnp.searchsorted(tile_end, jnp.arange(T, dtype=jnp.int32),
                         side='right'),
        NB - 1).astype(jnp.int32)

    b_of_edge = tgt_s // tn
    dest = (tile_start[b_of_edge] * te
            + (jnp.arange(E, dtype=jnp.int32) - row_start[b_of_edge]))

    tgt_pad = jnp.full((1, T * te), -1, jnp.int32).at[0, dest].set(tgt_s)

    return dict(order=order, dest=dest, tile_node=tile_node, tgt_pad=tgt_pad,
                T=T, te=te, tn=tn, Np=Np, NB=NB)


# --------------------------------------------------------------------------
# Fused GAT layer kernel (one grid step per edge tile, visited once):
#   edge messages (MXU) -> per-head scores -> exp(-LeakyReLU) -> weighted
#   messages -> ONE fused one-hot scatter matmul (messages + rowsums) ->
#   rowsum divide (+ELU) at the end of each node-block run.
# --------------------------------------------------------------------------
def _gat_layer_kernel(tile_node_ref, eh_ref, aT_ref, a2_ref, hx_ref, tgt_ref,
                      out_ref, acc_ref, *, alpha, apply_elu):
    t = pl.program_id(0)
    T = pl.num_programs(0)
    tn, Dp = out_ref.shape
    te = eh_ref.shape[0]

    nb = tile_node_ref[t]
    prev = tile_node_ref[jnp.maximum(t - 1, 0)]
    nxt = tile_node_ref[jnp.minimum(t + 1, T - 1)]
    is_first = jnp.logical_or(t == 0, nb != prev)
    is_last = jnp.logical_or(t == T - 1, nb != nxt)

    @pl.when(is_first)
    def _():
        acc_ref[...] = jnp.zeros_like(acc_ref)

    # Per-edge messages for ALL heads at once: (te,Fp)@(Fp,Dp) on the MXU.
    edge_m = jnp.dot(eh_ref[...], aT_ref[...],
                     preferred_element_type=jnp.float32)              # (te, Dp)

    # Per-head scores (block-diagonal a2), LeakyReLU, exp(-.)
    # NOTE: unstabilized exp(-leakyrelu(.)) matches the PyTorch reference.
    s = jnp.dot(edge_m, a2_ref[...], preferred_element_type=jnp.float32)
    s = jnp.where(s > 0, s, alpha * s)                                # (te, Hp)
    edge_e = jnp.exp(-s)

    # Broadcast each head's e over that head's nhid output columns.
    e_full = jnp.dot(edge_e, hx_ref[...], preferred_element_type=jnp.float32)
    edge_w = e_full * edge_m                                          # (te, Dp)

    # One-hot scatter-add restricted to this node tile.  Single fused bf16 MXU
    # matmul accumulates weighted messages and per-head rowsums together.
    local_tgt = tgt_ref[...] - nb * tn                                # (1, te)
    rows = jax.lax.broadcasted_iota(jnp.int32, (tn, te), 0)
    onehot = (rows == local_tgt).astype(jnp.bfloat16)                 # (tn, te)
    payload = jnp.concatenate([edge_w, edge_e], axis=1).astype(jnp.bfloat16)
    acc_ref[...] += jnp.dot(onehot, payload,
                            preferred_element_type=jnp.float32)       # (tn, Dp+Hp)

    @pl.when(is_last)
    def _():
        accw = acc_ref[:, :Dp]
        acce = acc_ref[:, Dp:]
        rowsum = jnp.dot(acce, hx_ref[...],
                         preferred_element_type=jnp.float32)          # (tn, Dp)
        rowsum = jnp.where(rowsum == 0.0, 1e-12, rowsum)              # e_rowsum[==0]=1e-12
        h = accw * pl.reciprocal(rowsum, approx=True)                 # EUP slot
        if apply_elu:
            h = jnp.where(h > 0, h, jnp.exp(jnp.minimum(h, 0.0)) - 1.0)   # ELU
        out_ref[...] = h


def gat_layer_fused(edge_h_sorted, layout, A, a2_list, nheads, nhid,
                    num_nodes, alpha, apply_elu=True,
                    vmem_limit_bytes=48 * 1024 * 1024):
    """One SpGraphAttentionLayer (all heads packed) as a single fused kernel.

    edge_h_sorted: (E, Fin) bf16 rows already ordered by layout['order'].
    """
    E, Fin = edge_h_sorted.shape
    D = nheads * nhid
    assert A.shape == (D, Fin)

    T, te, tn, Np = layout['T'], layout['te'], layout['tn'], layout['Np']
    Fp = _round_up(Fin, 128)
    Dp = _round_up(D, 128)
    Hp = 128                                      # lane-padded head axis

    # Edge features scattered once into the tile-packed bf16 buffer.
    eh = jnp.zeros((T * te, Fp), jnp.bfloat16).at[
        layout['dest'], :Fin].set(edge_h_sorted.astype(jnp.bfloat16))

    # Packed / padded weights (small, built once per call).
    aT = jnp.zeros((Fp, Dp), jnp.bfloat16).at[:Fin, :D].set(
        A.T.astype(jnp.bfloat16))
    head_sel = jnp.repeat(jnp.eye(nheads, dtype=jnp.float32), nhid, axis=0)
    a2_vals = jnp.concatenate(
        [a2.reshape(-1).astype(jnp.float32) for a2 in a2_list])       # (D,)
    a2 = jnp.zeros((Dp, Hp), jnp.float32).at[:D, :nheads].set(
        head_sel * a2_vals[:, None])
    hx = jnp.zeros((Hp, Dp), jnp.float32).at[:nheads, :D].set(head_sel.T)

    kernel = functools.partial(_gat_layer_kernel, alpha=alpha,
                               apply_elu=apply_elu)
    grid_spec = pltpu.PrefetchScalarGridSpec(
        num_scalar_prefetch=1,
        grid=(T,),
        in_specs=[
            pl.BlockSpec((te, Fp), lambda t, tnode: (t, 0)),     # edge_h tile
            # TODO(synk): pin the three grid-invariant operands below to
            # single-buffered pipelining (pipeline_mode=pl.Buffered(1)) once
            # buffer_count=1 is confirmed supported on the target jax build.
            pl.BlockSpec((Fp, Dp), lambda t, tnode: (0, 0)),     # packed a^T
            pl.BlockSpec((Dp, Hp), lambda t, tnode: (0, 0)),     # per-head a2
            pl.BlockSpec((Hp, Dp), lambda t, tnode: (0, 0)),     # head->cols
            pl.BlockSpec((1, te), lambda t, tnode: (0, t)),      # target ids
        ],
        out_specs=pl.BlockSpec((tn, Dp), lambda t, tnode: (tnode[t], 0)),
        scratch_shapes=[pltpu.VMEM((tn, Dp + Hp), jnp.float32)],
    )
    # TODO(synk): on v7x (2 TCs) the 1-D sorted-edge grid leaves one core
    # idle; a (core, tile) split of the tile runs would recover dual-TC use.
    out = pl.pallas_call(
        kernel,
        grid_spec=grid_spec,
        out_shape=jax.ShapeDtypeStruct((Np, Dp), jnp.float32),
        compiler_params=pltpu.CompilerParams(
            dimension_semantics=("arbitrary",),
            vmem_limit_bytes=vmem_limit_bytes),
    )(layout['tile_node'], eh, aT, a2, hx, layout['tgt_pad'])
    return out[:num_nodes, :D]


# --------------------------------------------------------------------------
# Row-tiled element-wise kernels (no padded-copy preambles).
# --------------------------------------------------------------------------
def _l2norm_kernel(x_ref, o_ref):
    x = x_ref[...]
    ss = jnp.sum(x * x, axis=1, keepdims=True)
    o_ref[...] = x * jax.lax.rsqrt(jnp.maximum(ss, 1e-24))   # == F.normalize(p=2)


def l2_normalize_rows(x, row_tile=512):
    N, D = x.shape
    tr = min(row_tile, _round_up(N, 8))
    return pl.pallas_call(
        _l2norm_kernel,
        grid=(pl.cdiv(N, tr),),
        in_specs=[pl.BlockSpec((tr, D), lambda i: (i, 0))],
        out_specs=pl.BlockSpec((tr, D), lambda i: (i, 0)),
        out_shape=jax.ShapeDtypeStruct((N, D), jnp.float32),
        compiler_params=pltpu.CompilerParams(
            dimension_semantics=("parallel",)),
    )(x.astype(jnp.float32))


def _entity_out_kernel(ent_ref, w_ref, mask_ref, gat_ref, o_ref):
    # entities_upgraded = ent @ W_entities, fused with mask*gat_out + L2 norm.
    up = jnp.dot(ent_ref[...], w_ref[...], preferred_element_type=jnp.float32)
    x = up + mask_ref[...] * gat_ref[...]
    ss = jnp.sum(x * x, axis=1, keepdims=True)
    o_ref[...] = x * jax.lax.rsqrt(jnp.maximum(ss, 1e-24))


def entity_output_fused(ent_bf16, W, mask, gat_out, row_tile=512):
    N, Fin = ent_bf16.shape
    D = W.shape[1]
    tr = min(row_tile, _round_up(N, 8))
    return pl.pallas_call(
        _entity_out_kernel,
        grid=(pl.cdiv(N, tr),),
        in_specs=[pl.BlockSpec((tr, Fin), lambda i: (i, 0)),
                  pl.BlockSpec((Fin, D), lambda i: (0, 0)),
                  pl.BlockSpec((tr, 1), lambda i: (i, 0)),
                  pl.BlockSpec((tr, D), lambda i: (i, 0))],
        out_specs=pl.BlockSpec((tr, D), lambda i: (i, 0)),
        out_shape=jax.ShapeDtypeStruct((N, D), jnp.float32),
        compiler_params=pltpu.CompilerParams(
            dimension_semantics=("parallel",)),
    )(ent_bf16, W.astype(jnp.bfloat16), mask.astype(jnp.float32),
      gat_out.astype(jnp.float32))


# --------------------------------------------------------------------------
# Model forward (gathers / concats / tiny matmuls are XLA glue).
# --------------------------------------------------------------------------
def spgat_forward(params, x, relation_embed, edge_list, edge_type,
                  edge_embed, edge_list_nhop, edge_type_nhop, alpha,
                  edge_tile=512, node_tile=512):
    N = x.shape[0]
    nheads = len(params['att_a'])
    nhid = params['att_a2'][0].shape[1]
    out1 = nheads * nhid

    edge_all = jnp.concatenate([edge_list, edge_list_nhop], axis=1)      # (2, E)
    tgt = edge_all[0]
    src = edge_all[1]
    E = int(tgt.shape[0])

    # Edge layout built ONCE (sort-by-target + tile packing), shared by both
    # GAT layers.  On v6e, edge_tile can be raised to 1024 for fewer steps.
    te = min(edge_tile, _round_up(E, 128))
    tn = min(node_tile, _round_up(int(N), 8))
    layout = build_edge_layout(tgt, int(N), te, tn)
    order = layout['order']
    tgt_s = tgt[order]
    src_s = src[order]

    # ---- layer 1: shared bf16 edge_h (sorted order), all heads packed ----
    edge_embed_nhop = (relation_embed[edge_type_nhop[:, 0]]
                       + relation_embed[edge_type_nhop[:, 1]])
    eemb_all = jnp.concatenate([edge_embed, edge_embed_nhop],
                               axis=0).astype(jnp.bfloat16)
    x_bf = x.astype(jnp.bfloat16)
    edge_h = jnp.concatenate([x_bf[tgt_s], x_bf[src_s], eemb_all[order]],
                             axis=1)                                     # bf16
    A_packed = jnp.concatenate(params['att_a'], axis=0)                  # (out1, Fin)
    x_cat = gat_layer_fused(edge_h, layout, A_packed, params['att_a2'],
                            nheads, nhid, N, alpha, apply_elu=True)
    # TODO(synk): train-mode dropout (SpGAT.dropout_layer and per-edge dropout
    # on edge_e) omitted — eval-mode forward.

    # ---- relation transform: tiny matmul, plain XLA ----
    out_relation_1 = (relation_embed.astype(jnp.float32)
                      @ params['gat_W'].astype(jnp.float32))

    # ---- layer 2 (out_att, single head; SpGAT wraps it in F.elu) ----
    rel1_bf = out_relation_1.astype(jnp.bfloat16)
    eemb1 = jnp.concatenate(
        [rel1_bf[edge_type],
         rel1_bf[edge_type_nhop[:, 0]] + rel1_bf[edge_type_nhop[:, 1]]],
        axis=0)
    x_cat_bf = x_cat.astype(jnp.bfloat16)
    edge_h_1 = jnp.concatenate(
        [x_cat_bf[tgt_s], x_cat_bf[src_s], eemb1[order]], axis=1)
    out_entity = gat_layer_fused(edge_h_1, layout, params['out_a'],
                                 [params['out_a2']], 1, out1, N, alpha,
                                 apply_elu=True)
    return out_entity, out_relation_1


def spkbgat_modified_forward(params, adj, batch_inputs, train_indices_nhop,
                             alpha):
    edge_list, edge_type = adj
    edge_list_nhop = jnp.stack([train_indices_nhop[:, 3],
                                train_indices_nhop[:, 0]], axis=0)       # (2, E_nhop)
    edge_type_nhop = jnp.stack([train_indices_nhop[:, 1],
                                train_indices_nhop[:, 2]], axis=1)       # (E_nhop, 2)

    # entity_embeddings.data = F.normalize(entity_embeddings, p=2, dim=1)
    ent = l2_normalize_rows(params['entity_embeddings'])
    rel = params['relation_embeddings']
    edge_embed = rel[edge_type]

    out_entity_gat, out_relation_1 = spgat_forward(
        params, ent, rel, edge_list, edge_type, edge_embed,
        edge_list_nhop, edge_type_nhop, alpha)

    N = ent.shape[0]
    # unique() unnecessary: scatter-set of 1.0 is idempotent.
    mask = jnp.zeros((N, 1), jnp.float32).at[batch_inputs[:, 2], 0].set(1.0)
    # entities_upgraded matmul fused with mask*gat + L2-normalize epilogue.
    out_entity_1 = entity_output_fused(ent.astype(jnp.bfloat16),
                                       params['W_entities'], mask,
                                       out_entity_gat)
    return out_entity_1, out_relation_1


# --------------------------------------------------------------------------
# Deterministic parameter init (shapes follow SpKBGATModified.__init__).
# --------------------------------------------------------------------------
def init_params(key, num_nodes, entity_in_dim, num_relation, relation_dim,
                nhid, nheads):
    def xavier(k, shape, gain=1.414):
        bound = gain * (6.0 / (shape[0] + shape[1])) ** 0.5
        return jax.random.uniform(k, shape, jnp.float32, -bound, bound)

    out1 = nhid * nheads
    ks = jax.random.split(key, 6 + 2 * nheads)
    params = {
        'entity_embeddings': jax.random.normal(
            ks[0], (num_nodes, entity_in_dim), jnp.float32),
        'relation_embeddings': jax.random.normal(
            ks[1], (num_relation, relation_dim), jnp.float32),
        'W_entities': xavier(ks[2], (entity_in_dim, out1)),
        'gat_W': xavier(ks[3], (relation_dim, out1)),
        # out_att: in=out1, out=out1, nrela_dim=out1 -> a:(out1, 3*out1)
        'out_a': xavier(ks[4], (out1, 2 * out1 + out1)),
        'out_a2': xavier(ks[5], (1, out1)),
        # per-head: a:(nhid, 2*entity_in_dim + relation_dim), a_2:(1, nhid)
        'att_a': [xavier(ks[6 + 2 * h],
                         (nhid, 2 * entity_in_dim + relation_dim))
                  for h in range(nheads)],
        'att_a2': [xavier(ks[7 + 2 * h], (1, nhid)) for h in range(nheads)],
    }
    return params


# --------------------------------------------------------------------------

if __name__ == "__main__":
    key = jax.random.PRNGKey(0)

    num_nodes, entity_in_dim = 32, 16
    num_relation, relation_dim = 6, 8
    entity_out_dim = (8, 16)
    nheads_GAT = (2, 2)
    alpha = 0.2
    E, E_nhop, B = 48, 16, 10

    kp, ke1, ke2, kt, kn, kb = jax.random.split(key, 6)
    params = init_params(kp, num_nodes, entity_in_dim, num_relation,
                         relation_dim, entity_out_dim[0], nheads_GAT[0])

    edge_list = jax.random.randint(ke1, (2, E), 0, num_nodes, jnp.int32)
    edge_type = jax.random.randint(ke2, (E,), 0, num_relation, jnp.int32)
    # train_indices_nhop columns: [entity, rel1, rel2, entity]
    nhop_ent = jax.random.randint(kt, (E_nhop, 2), 0, num_nodes, jnp.int32)
    nhop_rel = jax.random.randint(kn, (E_nhop, 2), 0, num_relation, jnp.int32)
    train_indices_nhop = jnp.stack(
        [nhop_ent[:, 0], nhop_rel[:, 0], nhop_rel[:, 1], nhop_ent[:, 1]],
        axis=1)
    batch_inputs = jax.random.randint(kb, (B, 3), 0, num_nodes, jnp.int32)

    out_entity, out_relation = spkbgat_modified_forward(
        params, (edge_list, edge_type), batch_inputs, train_indices_nhop,
        alpha)
    jax.block_until_ready((out_entity, out_relation))

    out1 = entity_out_dim[0] * nheads_GAT[0]
    assert out_entity.shape == (num_nodes, out1)
    assert out_relation.shape == (num_relation, out1)
    assert bool(jnp.all(jnp.isfinite(out_entity)))
    assert bool(jnp.all(jnp.isfinite(out_relation)))
    print("KERNEL_OK")
</pallas_src>

<mosaic_0001>
module attributes {stable_mosaic.version = 11 : i64} {
  func.func @_l2norm_kernel(%arg0: i32, %arg1: memref<32x16xf32, #tpu.memory_space<vmem>>, %arg2: memref<32x16xf32, #tpu.memory_space<vmem>>) attributes {dimension_semantics = [#tpu.dimension_semantics<parallel>], iteration_bounds = array<i64: 1>, scalar_prefetch = 0 : i64, scratch_operands = 0 : i64, tpu.core_type = #tpu.core_type<tc>, window_params = [{transform_indices = @transform_0, window_bounds = array<i64: 32, 16>}, {transform_indices = @transform_1, window_bounds = array<i64: 32, 16>}]} {
    %c0 = arith.constant 0 : index
    %c0_0 = arith.constant 0 : index
    %0 = vector.load %arg1[%c0, %c0_0] : memref<32x16xf32, #tpu.memory_space<vmem>>, vector<32x16xf32>
    %1 = arith.mulf %0, %0 : vector<32x16xf32>
    %cst = arith.constant dense<0.000000e+00> : vector<32xf32>
    %2 = vector.multi_reduction <add>, %1, %cst [1] : vector<32x16xf32> to vector<32xf32>
    %3 = vector.shape_cast %2 : vector<32xf32> to vector<32x1xf32>
    %cst_1 = arith.constant 1.000000e-24 : f32
    %4 = vector.broadcast %cst_1 : f32 to vector<32x1xf32>
    %5 = arith.maximumf %3, %4 : vector<32x1xf32>
    %6 = math.rsqrt %5 : vector<32x1xf32>
    %7 = vector.broadcast %6 : vector<32x1xf32> to vector<32x16xf32>
    %8 = arith.mulf %0, %7 : vector<32x16xf32>
    %c0_2 = arith.constant 0 : index
    %c0_3 = arith.constant 0 : index
    %9 = vector.load %arg2[%c0_2, %c0_3] : memref<32x16xf32, #tpu.memory_space<vmem>>, vector<32x16xf32>
    tpu.vector_store %arg2[%c0_2, %c0_3], %8 {strides = array<i32>} : memref<32x16xf32, #tpu.memory_space<vmem>>, vector<32x16xf32>,
    return
  }
  func.func @transform_0(%arg0: i32) -> (i32, i32) {
    %c0_i32 = arith.constant 0 : i32
    %c0_i32_0 = arith.constant 0 : i32
    return %arg0, %c0_i32 : i32, i32
  }
  func.func @transform_1(%arg0: i32) -> (i32, i32) {
    %c0_i32 = arith.constant 0 : i32
    %c0_i32_0 = arith.constant 0 : i32
    return %arg0, %c0_i32 : i32, i32
  }
}

</mosaic_0001>

<llo_original>
// kernel: tpu_custom_call.1
$region0: #{tpu_custom_call.1}
  #allocation0 [shape = 'u32[]', space=smem, size = 0x4, offset = 0x4, fixed_abs, tag = 'smem constant byte address 0x4 - core index']
  #allocation1 [shape = 'u32[72,128]{1,0:T(1,128)}', space=vmem, size = 0x9000, scoped, tag = 'internal scratch']
  %s0 = inlined_call_operand.vmem [shape: f32[32,16], index: 0, kind: input, shape index: {}]
  %s1 = inlined_call_operand.vmem [shape: f32[32,16], index: 1, kind: output, shape index: {}]
  %s2 = sld [smem:[#allocation0]]
  $region14: #{tpu_custom_call.1} parent=0
    _
  %s4 = ssub.s32 1, %s2
  %s5 = scalar_select 0, %s4, %s2
  // Predicated region
  $region2: #{tpu_custom_call.1} parent=0 // pred_check
    _
  $region3: #{tpu_custom_call.1} parent=0 // pred_check_branch
    %7 = sbr.rel (0) target = $region5
  $region4: #{tpu_custom_call.1} parent=0 // pred_region
    _
  $region5: #{tpu_custom_call.1} parent=0 // pred_fallthru
    _
  %v8 = vld [vmem:[%s0] sm:$0xff]
  %v9 = vld [vmem:[%s0 + $0x8] sm:$0xff]
  %v10 = vld [vmem:[%s0 + $0x10] sm:$0xff]
  %v11 = vld [vmem:[%s0 + $0x18] sm:$0xff]
  %v12 = vmul.f32 %v8, %v8
  %v13 = vmul.f32 %v9, %v9
  %v14 = vmul.f32 %v10, %v10
  %v15 = vmul.f32 %v11, %v11
  %vm16 = vcmask 130048
  %v17 = vsel %vm16, %v12, 0.0
  %18 = vadd.xlane.f32.xlu0 %v17
  %v19 = vpop.xlane.xlu0 %18
  %v20 = vsel %vm16, %v13, 0.0
  %21 = vadd.xlane.f32.xlu0 %v20
  %v22 = vpop.xlane.xlu0 %21
  %v23 = vsel %vm16, %v14, 0.0
  %24 = vadd.xlane.f32.xlu0 %v23
  %v25 = vpop.xlane.xlu0 %24
  %v26 = vsel %vm16, %v15, 0.0
  %27 = vadd.xlane.f32.xlu0 %v26
  %v28 = vpop.xlane.xlu0 %27
  %v29 = vmax.f32 %v19, 1e-24
  %v30 = vmax.f32 %v22, 1e-24
  %v31 = vmax.f32 %v25, 1e-24
  %v32 = vmax.f32 %v28, 1e-24
  %v33 = vrsqrt.pop %v29
  %v34 = vmul.f32 %v33, %v29
  %v35 = vmul.f32 %v34, %v33
  %v36 = vmul.f32 0.5, %v35
  %v37 = vsub.f32 1.5, %v36
  %v38 = vmul.f32 %v33, %v37
  %vm39 = vweird.f32 %v29
  %vm40 = vweird.f32 %v33
  %vm41 = vmor %vm39, %vm40
  %v42 = vsel %vm41, %v33, %v38
  %v43 = vrsqrt.pop %v30
  %v44 = vmul.f32 %v43, %v30
  %v45 = vmul.f32 %v44, %v43
  %v46 = vmul.f32 0.5, %v45
  %v47 = vsub.f32 1.5, %v46
  %v48 = vmul.f32 %v43, %v47
  %vm49 = vweird.f32 %v30
  %vm50 = vweird.f32 %v43
  %vm51 = vmor %vm49, %vm50
  %v52 = vsel %vm51, %v43, %v48
  %v53 = vrsqrt.pop %v31
  %v54 = vmul.f32 %v53, %v31
  %v55 = vmul.f32 %v54, %v53
  %v56 = vmul.f32 0.5, %v55
  %v57 = vsub.f32 1.5, %v56
  %v58 = vmul.f32 %v53, %v57
  %vm59 = vweird.f32 %v31
  %vm60 = vweird.f32 %v53
  %vm61 = vmor %vm59, %vm60
  %v62 = vsel %vm61, %v53, %v58
  %v63 = vrsqrt.pop %v32
  %v64 = vmul.f32 %v63, %v32
  %v65 = vmul.f32 %v64, %v63
  %v66 = vmul.f32 0.5, %v65
  %v67 = vsub.f32 1.5, %v66
  %v68 = vmul.f32 %v63, %v67
  %vm69 = vweird.f32 %v32
  %vm70 = vweird.f32 %v63
  %vm71 = vmor %vm69, %vm70
  %v72 = vsel %vm71, %v63, %v68
  %v73 = vmul.f32 %v8, %v42
  %v74 = vmul.f32 %v9, %v52
  %v75 = vmul.f32 %v10, %v62
  %v76 = vmul.f32 %v11, %v72
  %77 = vst.msk [vmem:[%s1] sm:$0xff] %vm16, %v73
  %78 = vst.msk [vmem:[%s1 + $0x8] sm:$0xff] %vm16, %v74
  %79 = vst.msk [vmem:[%s1 + $0x10] sm:$0xff] %vm16, %v75
  %80 = vst.msk [vmem:[%s1 + $0x18] sm:$0xff] %vm16, %v76
  // Predicated region
  $region6: #{tpu_custom_call.1} parent=0 // pred_check
    _
  $region7: #{tpu_custom_call.1} parent=0 // pred_check_branch
    %82 = sbr.rel (0) target = $region9
  $region8: #{tpu_custom_call.1} parent=0 // pred_region
    _
  $region9: #{tpu_custom_call.1} parent=0 // pred_fallthru
    _
  // Predicated region
  $region10: #{tpu_custom_call.1} parent=0 // pred_check
    _
  $region11: #{tpu_custom_call.1} parent=0 // pred_check_branch
    %84 = sbr.rel (0) target = $region13
  $region12: #{tpu_custom_call.1} parent=0 // pred_region
    _
  $region13: #{tpu_custom_call.1} parent=0 // pred_fallthru
    _

</llo_original>
